<compile_context>
chip_gen: v5e
topology: v5e:2x2
jax: 0.10.0
libtpu: 0.0.40
codegen_flags: <defaults>
</compile_context>

<pallas_src>
import jax
import jax.numpy as jnp
from jax.experimental import pallas as pl
from jax.experimental.pallas import tpu as pltpu

_LANES = 128        # vreg lane width
_SUBLANES = 8       # f32 vreg sublane count
_ROW_TILE = 4096    # rows per grid step: 4096*128*4B = 2 MiB/block (good on all gens)
_SMALL_BATCH = 1024 # ragged batches up to this size run on [B,1] directly (no pad/slice)

_SMEM_SPEC = pl.BlockSpec(memory_space=pltpu.MemorySpace.SMEM)
_VMEM_SPEC = pl.BlockSpec(memory_space=pltpu.MemorySpace.VMEM)


def _affine_kernel(w_ref, b_ref, x_ref, o_ref):
    # y = x * w + b on the VPU; w / b are SMEM scalars.
    w = w_ref[0, 0]
    b = b_ref[0, 0]
    o_ref[...] = (x_ref[...].astype(jnp.float32) * w + b).astype(o_ref.dtype)


def prepare_params(weight, bias):
    """One-time parameter prep: PyTorch Linear(1,1) layout -> (1,1) SMEM scalars."""
    out_dim, in_dim = weight.shape
    assert in_dim == 1 and out_dim == 1, "LinearRegressionModel is nn.Linear(1, 1)"
    w_s = weight.reshape(1, 1).astype(jnp.float32)
    b_s = bias.reshape(1, 1).astype(jnp.float32)
    return w_s, b_s


def _gridless_call(x_arr, w_s, b_s):
    """Whole array resident in VMEM, single kernel invocation (no grid)."""
    return pl.pallas_call(
        _affine_kernel,
        out_shape=jax.ShapeDtypeStruct(x_arr.shape, x_arr.dtype),
        in_specs=[_SMEM_SPEC, _SMEM_SPEC, _VMEM_SPEC],
        out_specs=_VMEM_SPEC,
    )(w_s, b_s, x_arr)


def _gridded_call(x2d, w_s, b_s):
    """Row-tiled streaming path over a lane-dense [rows, 128] slab."""
    rows, lanes = x2d.shape
    n_elems = rows * lanes
    itemsize = jnp.dtype(x2d.dtype).itemsize
    cost = pl.CostEstimate(
        flops=2 * n_elems,                    # mul + add per element
        transcendentals=0,
        bytes_accessed=2 * n_elems * itemsize # read-B + write-B, purely mem-bound
    )
    return pl.pallas_call(
        _affine_kernel,
        out_shape=jax.ShapeDtypeStruct((rows, lanes), x2d.dtype),
        grid=(pl.cdiv(rows, _ROW_TILE),),     # partial final block is masked by Pallas
        in_specs=[_SMEM_SPEC, _SMEM_SPEC,
                  pl.BlockSpec((_ROW_TILE, _LANES), lambda i: (i, 0))],
        out_specs=pl.BlockSpec((_ROW_TILE, _LANES), lambda i: (i, 0)),
        compiler_params=pltpu.CompilerParams(
            dimension_semantics=("parallel",)),
        cost_estimate=cost,
    )(w_s, b_s, x2d)


@jax.jit
def linear_forward(x, w_s, b_s):
    """x: [B, 1] -> [B, 1], equivalent to nn.Linear(1, 1).forward."""
    batch, in_dim = x.shape
    assert in_dim == 1

    if batch % _LANES == 0:
        # Fast path: [B,1] -> [rows,128] is a metadata-only reshape (no pad
        # copy in, no slice copy out) -> kernel sees exactly read-B + write-B.
        rows = batch // _LANES
        x2d = x.reshape(rows, _LANES)
        if rows <= _ROW_TILE:
            y2d = _gridless_call(x2d, w_s, b_s)
        else:
            y2d = _gridded_call(x2d, w_s, b_s)
        return y2d.reshape(batch, 1)

    if batch <= _SMALL_BATCH:
        # Tiny ragged batch: launch cost dominates; run on [B,1] as-is and
        # skip the pad / slice copies entirely.
        return _gridless_call(x, w_s, b_s)

    # Large ragged batch: pad only to the next 8-row multiple of 128 lanes
    # (never to a row-tile multiple); Pallas masks the final partial block.
    rows = pl.cdiv(batch, _LANES)
    rows = ((rows + _SUBLANES - 1) // _SUBLANES) * _SUBLANES
    padded = rows * _LANES
    x2d = jnp.pad(x.reshape(-1), (0, padded - batch)).reshape(rows, _LANES)
    if rows <= _ROW_TILE:
        y2d = _gridless_call(x2d, w_s, b_s)
    else:
        y2d = _gridded_call(x2d, w_s, b_s)
    return y2d.reshape(-1)[:batch].reshape(batch, 1)


if __name__ == "__main__":
    key = jax.random.PRNGKey(0)
    kx, kw, kb, kx2, kx3 = jax.random.split(key, 5)

    # Deterministic synthetic parameters (shapes match nn.Linear(1, 1)).
    weight = jax.random.uniform(kw, (1, 1), jnp.float32, minval=-1.0, maxval=1.0)
    bias = jax.random.uniform(kb, (1,), jnp.float32, minval=-1.0, maxval=1.0)
    w_s, b_s = prepare_params(weight, bias)

    # Toy batch (matches the tutorial usage): tiny ragged path, no pad/slice.
    batch = 8
    x = jax.random.normal(kx, (batch, 1), jnp.float32)
    y = linear_forward(x, w_s, b_s)
    jax.block_until_ready(y)
    y_ref = x @ weight.T + bias
    assert y.shape == (batch, 1)
    assert jnp.allclose(y, y_ref, atol=1e-5, rtol=1e-5)

    # Large ragged batch: minimal pad, gridless lane-dense slab.
    big_batch = 100_000
    xb = jax.random.normal(kx2, (big_batch, 1), jnp.float32)
    yb = linear_forward(xb, w_s, b_s)
    jax.block_until_ready(yb)
    yb_ref = xb @ weight.T + bias
    assert yb.shape == (big_batch, 1)
    assert jnp.allclose(yb, yb_ref, atol=1e-5, rtol=1e-5)

    # Multiple-of-128 batch large enough to hit the streaming grid path with a
    # partial final block (rows = 5000, grid = cdiv(5000, 4096) = 2): exercises
    # the metadata-only reshape (no pad/slice) and boundary-block masking.
    huge_batch = 128 * 5000
    xc = jax.random.normal(kx3, (huge_batch, 1), jnp.float32)
    yc = linear_forward(xc, w_s, b_s)
    jax.block_until_ready(yc)
    yc_ref = xc @ weight.T + bias
    assert yc.shape == (huge_batch, 1)
    assert jnp.allclose(yc, yc_ref, atol=1e-5, rtol=1e-5)

    print("KERNEL_OK")
</pallas_src>

<mosaic_0001>
module attributes {stable_mosaic.version = 11 : i64} {
  func.func @_affine_kernel(%arg0: memref<1x1xf32, #tpu.memory_space<smem>>, %arg1: memref<1x1xf32, #tpu.memory_space<smem>>, %arg2: memref<8x1xf32, #tpu.memory_space<vmem>>, %arg3: memref<8x1xf32, #tpu.memory_space<vmem>>) attributes {dimension_semantics = [], scalar_prefetch = 0 : i64, scratch_operands = 0 : i64, tpu.core_type = #tpu.core_type<tc>} {
    %c0 = arith.constant 0 : index
    %c0_0 = arith.constant 0 : index
    %0 = memref.load %arg0[%c0, %c0_0] : memref<1x1xf32, #tpu.memory_space<smem>>
    %c0_1 = arith.constant 0 : index
    %c0_2 = arith.constant 0 : index
    %1 = memref.load %arg1[%c0_1, %c0_2] : memref<1x1xf32, #tpu.memory_space<smem>>
    %c0_3 = arith.constant 0 : index
    %c0_4 = arith.constant 0 : index
    %2 = vector.load %arg2[%c0_3, %c0_4] : memref<8x1xf32, #tpu.memory_space<vmem>>, vector<8x1xf32>
    %3 = vector.broadcast %0 : f32 to vector<8x1xf32>
    %4 = arith.mulf %2, %3 : vector<8x1xf32>
    %5 = vector.broadcast %1 : f32 to vector<8x1xf32>
    %6 = arith.addf %4, %5 : vector<8x1xf32>
    %c0_5 = arith.constant 0 : index
    %c0_6 = arith.constant 0 : index
    %7 = vector.load %arg3[%c0_5, %c0_6] : memref<8x1xf32, #tpu.memory_space<vmem>>, vector<8x1xf32>
    tpu.vector_store %arg3[%c0_5, %c0_6], %6 {strides = array<i32>} : memref<8x1xf32, #tpu.memory_space<vmem>>, vector<8x1xf32>,
    return
  }
}

</mosaic_0001>

<llo_original>
// kernel: linear_forward.1
$region0: #{linear_forward.1}
  #allocation0 [shape = 'u32[]', space=smem, size = 0x4, offset = 0x4, fixed_abs, tag = 'smem constant byte address 0x4 - core index']
  #allocation1 [shape = 'u32[72,128]{1,0:T(1,128)}', space=vmem, size = 0x9000, scoped, tag = 'internal scratch']
  #allocation2 [shape = 'f32[1,1]{1,0:T(1,128)S(6)}', space=smem, size = 0x200, scoped, tag = 'scoped memory for linear_forward.1']
  #allocation3 [shape = 'f32[1,1]{1,0:T(1,128)S(6)}', space=smem, size = 0x200, scoped, tag = 'scoped memory for linear_forward.1']
  %s0 = inlined_call_operand.<no memory space> [shape: f32[1,1], index: 0, kind: input, shape index: {}]
  %s1 = inlined_call_operand.<no memory space> [shape: f32[1,1], index: 1, kind: input, shape index: {}]
  %s2 = inlined_call_operand.vmem [shape: f32[8,1], index: 2, kind: input, shape index: {}]
  %s3 = inlined_call_operand.vmem [shape: f32[8,1], index: 3, kind: output, shape index: {}]
  %s4 = sld [smem:[#allocation0]]
  $region22: #{linear_forward.1} parent=0
    _
  %s6 = ssub.s32 1, %s4
  %s7 = scalar_select 0, %s6, %s4
  %8 = sst [smem:[#allocation2]] %s0
  %9 = sst [smem:[#allocation3]] %s1
  // Predicated region
  $region2: #{linear_forward.1} parent=0 // pred_check
    _
  $region3: #{linear_forward.1} parent=0 // pred_check_branch
    %11 = sbr.rel (0) target = $region5
  $region4: #{linear_forward.1} parent=0 // pred_region
    _
  $region5: #{linear_forward.1} parent=0 // pred_fallthru
    _
  // Predicated region
  $region6: #{linear_forward.1} parent=0 // pred_check
    _
  $region7: #{linear_forward.1} parent=0 // pred_check_branch
    %13 = sbr.rel (0) target = $region9
  $region8: #{linear_forward.1} parent=0 // pred_region
    _
  $region9: #{linear_forward.1} parent=0 // pred_fallthru
    _
  // Predicated region
  $region10: #{linear_forward.1} parent=0 // pred_check
    _
  $region11: #{linear_forward.1} parent=0 // pred_check_branch
    %15 = sbr.rel (0) target = $region13
  $region12: #{linear_forward.1} parent=0 // pred_region
    _
  $region13: #{linear_forward.1} parent=0 // pred_fallthru
    _
  %s16 = sld [smem:[#allocation2]]
  %s17 = sld [smem:[#allocation3]]
  %v18 = vld [vmem:[%s2] sm:$0xff]
  %v19 = vstv %s16
  %v20 = vmul.f32 %v18, %v19
  %v21 = vstv %s17
  %v22 = vadd.f32 %v20, %v21
  %vm23 = vcmask 7168
  %24 = vst.msk [vmem:[%s3] sm:$0xff] %vm23, %v22
  // Predicated region
  $region14: #{linear_forward.1} parent=0 // pred_check
    _
  $region15: #{linear_forward.1} parent=0 // pred_check_branch
    %26 = sbr.rel (0) target = $region17
  $region16: #{linear_forward.1} parent=0 // pred_region
    _
  $region17: #{linear_forward.1} parent=0 // pred_fallthru
    _
  // Predicated region
  $region18: #{linear_forward.1} parent=0 // pred_check
    _
  $region19: #{linear_forward.1} parent=0 // pred_check_branch
    %28 = sbr.rel (0) target = $region21
  $region20: #{linear_forward.1} parent=0 // pred_region
    _
  $region21: #{linear_forward.1} parent=0 // pred_fallthru
    _

</llo_original>
